<compile_context>
chip_gen: v5e
topology: v5e:2x2
jax: 0.10.0
libtpu: 0.0.40
codegen_flags: <defaults>
</compile_context>

<pallas_src>
import jax
import jax.numpy as jnp
from jax.experimental import pallas as pl
from jax.experimental.pallas import tpu as pltpu


def _round_up(x, m):
    return ((x + m - 1) // m) * m


def _make_critic_kernel(linear3_on_mxu):
    def critic_kernel(x_ref, w1_ref, b1_ref, w2_ref, b2_ref, w3_ref, b3_ref,
                      o_ref):
        """One batch tile, feature-major layout.

        x_ref : (n_feat, TM)   fused cat([state, action]) tile, MXU dtype
        w1    : (H, n_feat)    w2 : (H, H)        -- MXU dtype (bf16 default)
        b1    : (H, 1)         b2 : (H, 1)        -- f32
        w3    : (H, 1) [VPU path]  or  (1, H) [MXU path]
        b3    : (1, 1)
        o_ref : (1, TM)        lane-dense output row, f32
        """
        wdt = w1_ref.dtype  # matmul-operand dtype

        # Linear1 + ReLU (single merged dot over the fused feature axis).
        h1 = (jnp.dot(w1_ref[...], x_ref[...],
                      preferred_element_type=jnp.float32) + b1_ref[...])
        h1 = jnp.maximum(h1, 0.0)                     # f32 VPU (v5e-safe)

        # Linear2 + ReLU.
        h2 = (jnp.dot(w2_ref[...], h1.astype(wdt),
                      preferred_element_type=jnp.float32) + b2_ref[...])
        h2 = jnp.maximum(h2, 0.0)

        # Linear3 (single output feature).
        if linear3_on_mxu:
            # (1,H) @ (H,TM) on the MXU -- preferred on v6e/v7x (VALU relief).
            q = (jnp.dot(w3_ref[...], h2.astype(wdt),
                         preferred_element_type=jnp.float32) + b3_ref[...])
        else:
            # VPU multiply + sublane reduce -- preferred on MXU-bound v5e.
            q = jnp.sum(h2 * w3_ref[...], axis=0, keepdims=True) + b3_ref[...]
        o_ref[...] = q.astype(o_ref.dtype)

    return critic_kernel


def critic_forward(state, action, params, *, tile_batch=2048,
                   mxu_dtype=jnp.bfloat16, linear3_on_mxu=False):
    """state: (B, n_states), action: (B, n_actions) -> (B, 1) float32.

    mxu_dtype      : dtype of MXU operands (weights + activations fed to dots).
                     bf16 by default on all generations; pass jnp.float32 for
                     an exact-f32 path.
    linear3_on_mxu : route the 1-row Linear3 through the MXU (v6e/v7x tuning).
    """
    w1, b1, w2, b2, w3, b3 = params
    B = state.shape[0]
    n_feat = state.shape[1] + action.shape[1]

    # ---- batch tile: multiple of 128 (lane axis), >=2 tiles for megacore ----
    tm_cap = _round_up(B, 128)
    if B >= 256:
        tm_cap = min(tm_cap, _round_up(pl.cdiv(B, 2), 128))
    tm = min(_round_up(tile_batch, 128), tm_cap)
    num_tiles = pl.cdiv(B, tm)
    b_pad = num_tiles * tm

    # ---- wrapper-side prep: fused concat + cast + pad + transpose (one op
    #      chain XLA fuses; inputs enter the kernel already in MXU dtype) ----
    x = jnp.concatenate([state, action], axis=1).astype(mxu_dtype)  # (B, n_feat)
    x_t = jnp.pad(x, ((0, b_pad - B), (0, 0))).T                    # (n_feat, b_pad)

    # Weights: MXU operands in mxu_dtype, elementwise operands stay f32.
    w1_k = w1.astype(mxu_dtype)                    # (H, n_feat)
    w2_k = w2.astype(mxu_dtype)                    # (H, H)
    b1_k = b1.astype(jnp.float32)                  # (H, 1)
    b2_k = b2.astype(jnp.float32)                  # (H, 1)
    b3_k = b3.astype(jnp.float32)                  # (1, 1)
    if linear3_on_mxu:
        w3_k = w3.T.astype(mxu_dtype)              # (1, H) row for the MXU dot
    else:
        w3_k = w3.astype(jnp.float32)              # (H, 1) column for the VPU

    full = lambda arr: pl.BlockSpec(arr.shape, lambda i: (0,) * arr.ndim)

    out = pl.pallas_call(
        _make_critic_kernel(linear3_on_mxu),
        out_shape=jax.ShapeDtypeStruct((1, b_pad), jnp.float32),
        grid_spec=pltpu.PrefetchScalarGridSpec(
            num_scalar_prefetch=0,
            grid=(num_tiles,),
            in_specs=[
                pl.BlockSpec((n_feat, tm), lambda i: (0, i)),   # fused input tile
                full(w1_k), full(b1_k),                          # weights/biases stay
                full(w2_k), full(b2_k),                          # VMEM-resident
                full(w3_k), full(b3_k),
            ],
            out_specs=pl.BlockSpec((1, tm), lambda i: (0, i)),
        ),
        compiler_params=pltpu.CompilerParams(
            dimension_semantics=("parallel",),
            vmem_limit_bytes=32 * 1024 * 1024,
        ),
    )(x_t, w1_k, b1_k, w2_k, b2_k, w3_k, b3_k)

    # Back to the PyTorch-shaped (B, 1) column.
    return out[0, :B][:, None]


def init_critic_params(key, n_states, n_actions, hidden_dim=256, init_w=0.003):
    """PyTorch nn.Linear layout: W is (out_features, in_features).
       Biases are stored as (out_features, 1) columns; linear3's weight is
       stored transposed as (hidden, 1).
       linear1/linear2: U(-1/sqrt(fan_in), 1/sqrt(fan_in)); linear3: U(-init_w, init_w)."""
    k1w, k1b, k2w, k2b, k3w, k3b = jax.random.split(key, 6)
    in1 = n_states + n_actions

    bound1 = 1.0 / (in1 ** 0.5)
    w1 = jax.random.uniform(k1w, (hidden_dim, in1), jnp.float32, -bound1, bound1)
    b1 = jax.random.uniform(k1b, (hidden_dim, 1), jnp.float32, -bound1, bound1)

    bound2 = 1.0 / (hidden_dim ** 0.5)
    w2 = jax.random.uniform(k2w, (hidden_dim, hidden_dim), jnp.float32, -bound2, bound2)
    b2 = jax.random.uniform(k2b, (hidden_dim, 1), jnp.float32, -bound2, bound2)

    w3 = jax.random.uniform(k3w, (hidden_dim, 1), jnp.float32, -init_w, init_w)
    b3 = jax.random.uniform(k3b, (1, 1), jnp.float32, -init_w, init_w)

    return (w1, b1, w2, b2, w3, b3)


def critic_reference(state, action, params):
    """Pure-JAX reference (PyTorch semantics) for correctness check."""
    w1, b1, w2, b2, w3, b3 = params
    x = jnp.concatenate([state, action], axis=1)
    x = jnp.maximum(x @ w1.T + b1.T, 0.0)
    x = jnp.maximum(x @ w2.T + b2.T, 0.0)
    return x @ w3 + b3


if __name__ == "__main__":
    # Small shapes consistent with the module's forward.
    batch, n_states, n_actions, hidden = 8, 8, 4, 32

    key = jax.random.PRNGKey(0)
    k_params, k_state, k_action = jax.random.split(key, 3)

    params = init_critic_params(k_params, n_states, n_actions, hidden_dim=hidden,
                                init_w=0.003)
    state = jax.random.normal(k_state, (batch, n_states), jnp.float32)
    action = jax.random.normal(k_action, (batch, n_actions), jnp.float32)

    ref = critic_reference(state, action, params)

    # Exact-f32 path (tight tolerance).
    out_f32 = jax.block_until_ready(
        critic_forward(state, action, params, mxu_dtype=jnp.float32))
    assert out_f32.shape == (batch, 1), out_f32.shape
    assert jnp.allclose(out_f32, ref, atol=1e-4, rtol=1e-5), (out_f32, ref)

    # Default path: bf16 MXU operands on every generation (f32 accumulation
    # and f32 elementwise), Linear3 on the VPU.
    out_bf16 = jax.block_until_ready(critic_forward(state, action, params))
    assert out_bf16.shape == (batch, 1), out_bf16.shape
    assert jnp.allclose(out_bf16, ref, atol=2e-2), (out_bf16, ref)

    # v6e/v7x tuning knob: Linear3 as a (1,H)@(H,TM) MXU dot.
    out_mxu3 = jax.block_until_ready(
        critic_forward(state, action, params, linear3_on_mxu=True))
    assert out_mxu3.shape == (batch, 1), out_mxu3.shape
    assert jnp.allclose(out_mxu3, ref, atol=2e-2), (out_mxu3, ref)

    print("KERNEL_OK")
</pallas_src>

<mosaic_0001>
module attributes {stable_mosaic.version = 11 : i64} {
  func.func @critic_kernel(%arg0: i32, %arg1: memref<12x128xf32, #tpu.memory_space<vmem>>, %arg2: memref<32x12xf32, #tpu.memory_space<vmem>>, %arg3: memref<32x1xf32, #tpu.memory_space<vmem>>, %arg4: memref<32x32xf32, #tpu.memory_space<vmem>>, %arg5: memref<32x1xf32, #tpu.memory_space<vmem>>, %arg6: memref<32x1xf32, #tpu.memory_space<vmem>>, %arg7: memref<1x1xf32, #tpu.memory_space<vmem>>, %arg8: memref<1x128xf32, #tpu.memory_space<vmem>>) attributes {dimension_semantics = [#tpu.dimension_semantics<parallel>], iteration_bounds = array<i64: 1>, scalar_prefetch = 0 : i64, scratch_operands = 0 : i64, tpu.core_type = #tpu.core_type<tc>, window_params = [{transform_indices = @transform_0, window_bounds = array<i64: 12, 128>}, {pipeline_mode = #tpu.pipeline_mode<synchronous>, transform_indices = @transform_1, window_bounds = array<i64: 32, 12>}, {pipeline_mode = #tpu.pipeline_mode<synchronous>, transform_indices = @transform_2, window_bounds = array<i64: 32, 1>}, {pipeline_mode = #tpu.pipeline_mode<synchronous>, transform_indices = @transform_3, window_bounds = array<i64: 32, 32>}, {pipeline_mode = #tpu.pipeline_mode<synchronous>, transform_indices = @transform_4, window_bounds = array<i64: 32, 1>}, {pipeline_mode = #tpu.pipeline_mode<synchronous>, transform_indices = @transform_5, window_bounds = array<i64: 32, 1>}, {pipeline_mode = #tpu.pipeline_mode<synchronous>, transform_indices = @transform_6, window_bounds = array<i64: 1, 1>}, {transform_indices = @transform_7, window_bounds = array<i64: 1, 128>}]} {
    %c0 = arith.constant 0 : index
    %c0_0 = arith.constant 0 : index
    %0 = vector.load %arg2[%c0, %c0_0] : memref<32x12xf32, #tpu.memory_space<vmem>>, vector<32x12xf32>
    %c0_1 = arith.constant 0 : index
    %c0_2 = arith.constant 0 : index
    %1 = vector.load %arg1[%c0_1, %c0_2] : memref<12x128xf32, #tpu.memory_space<vmem>>, vector<12x128xf32>
    %cst = arith.constant dense<0.000000e+00> : vector<32x128xf32>
    %2 = tpu.matmul %0, %1, %cst {dimension_numbers = #tpu.dot_dimension_numbers<[1], [0], [0], [1], [0, 0, 1, 1], [], []>} : vector<32x12xf32>, vector<12x128xf32>, vector<32x128xf32> -> vector<32x128xf32>
    %c0_3 = arith.constant 0 : index
    %c0_4 = arith.constant 0 : index
    %3 = vector.load %arg3[%c0_3, %c0_4] : memref<32x1xf32, #tpu.memory_space<vmem>>, vector<32x1xf32>
    %4 = vector.broadcast %3 : vector<32x1xf32> to vector<32x128xf32>
    %5 = arith.addf %2, %4 : vector<32x128xf32>
    %cst_5 = arith.constant 0.000000e+00 : f32
    %6 = vector.broadcast %cst_5 : f32 to vector<32x128xf32>
    %7 = arith.maximumf %5, %6 : vector<32x128xf32>
    %c0_6 = arith.constant 0 : index
    %c0_7 = arith.constant 0 : index
    %8 = vector.load %arg4[%c0_6, %c0_7] : memref<32x32xf32, #tpu.memory_space<vmem>>, vector<32x32xf32>
    %cst_8 = arith.constant dense<0.000000e+00> : vector<32x128xf32>
    %9 = tpu.matmul %8, %7, %cst_8 {dimension_numbers = #tpu.dot_dimension_numbers<[1], [0], [0], [1], [0, 0, 1, 1], [], []>} : vector<32x32xf32>, vector<32x128xf32>, vector<32x128xf32> -> vector<32x128xf32>
    %c0_9 = arith.constant 0 : index
    %c0_10 = arith.constant 0 : index
    %10 = vector.load %arg5[%c0_9, %c0_10] : memref<32x1xf32, #tpu.memory_space<vmem>>, vector<32x1xf32>
    %11 = vector.broadcast %10 : vector<32x1xf32> to vector<32x128xf32>
    %12 = arith.addf %9, %11 : vector<32x128xf32>
    %cst_11 = arith.constant 0.000000e+00 : f32
    %13 = vector.broadcast %cst_11 : f32 to vector<32x128xf32>
    %14 = arith.maximumf %12, %13 : vector<32x128xf32>
    %c0_12 = arith.constant 0 : index
    %c0_13 = arith.constant 0 : index
    %15 = vector.load %arg6[%c0_12, %c0_13] : memref<32x1xf32, #tpu.memory_space<vmem>>, vector<32x1xf32>
    %16 = vector.broadcast %15 : vector<32x1xf32> to vector<32x128xf32>
    %17 = arith.mulf %14, %16 : vector<32x128xf32>
    %cst_14 = arith.constant dense<0.000000e+00> : vector<128xf32>
    %18 = vector.multi_reduction <add>, %17, %cst_14 [0] : vector<32x128xf32> to vector<128xf32>
    %19 = vector.shape_cast %18 : vector<128xf32> to vector<1x128xf32>
    %c0_15 = arith.constant 0 : index
    %c0_16 = arith.constant 0 : index
    %20 = vector.load %arg7[%c0_15, %c0_16] : memref<1x1xf32, #tpu.memory_space<vmem>>, vector<1x1xf32>
    %21 = vector.broadcast %20 : vector<1x1xf32> to vector<1x128xf32>
    %22 = arith.addf %19, %21 : vector<1x128xf32>
    %c0_17 = arith.constant 0 : index
    %c0_18 = arith.constant 0 : index
    %23 = vector.load %arg8[%c0_17, %c0_18] : memref<1x128xf32, #tpu.memory_space<vmem>>, vector<1x128xf32>
    tpu.vector_store %arg8[%c0_17, %c0_18], %22 {strides = array<i32>} : memref<1x128xf32, #tpu.memory_space<vmem>>, vector<1x128xf32>,
    return
  }
  func.func @transform_0(%arg0: i32) -> (i32, i32) {
    %c0_i32 = arith.constant 0 : i32
    %c0_i32_0 = arith.constant 0 : i32
    return %c0_i32, %arg0 : i32, i32
  }
  func.func @transform_1(%arg0: i32) -> (i32, i32) {
    %c0_i32 = arith.constant 0 : i32
    %c0_i32_0 = arith.constant 0 : i32
    %c0_i32_1 = arith.constant 0 : i32
    return %c0_i32, %c0_i32_0 : i32, i32
  }
  func.func @transform_2(%arg0: i32) -> (i32, i32) {
    %c0_i32 = arith.constant 0 : i32
    %c0_i32_0 = arith.constant 0 : i32
    %c0_i32_1 = arith.constant 0 : i32
    return %c0_i32, %c0_i32_0 : i32, i32
  }
  func.func @transform_3(%arg0: i32) -> (i32, i32) {
    %c0_i32 = arith.constant 0 : i32
    %c0_i32_0 = arith.constant 0 : i32
    %c0_i32_1 = arith.constant 0 : i32
    return %c0_i32, %c0_i32_0 : i32, i32
  }
  func.func @transform_4(%arg0: i32) -> (i32, i32) {
    %c0_i32 = arith.constant 0 : i32
    %c0_i32_0 = arith.constant 0 : i32
    %c0_i32_1 = arith.constant 0 : i32
    return %c0_i32, %c0_i32_0 : i32, i32
  }
  func.func @transform_5(%arg0: i32) -> (i32, i32) {
    %c0_i32 = arith.constant 0 : i32
    %c0_i32_0 = arith.constant 0 : i32
    %c0_i32_1 = arith.constant 0 : i32
    return %c0_i32, %c0_i32_0 : i32, i32
  }
  func.func @transform_6(%arg0: i32) -> (i32, i32) {
    %c0_i32 = arith.constant 0 : i32
    %c0_i32_0 = arith.constant 0 : i32
    %c0_i32_1 = arith.constant 0 : i32
    return %c0_i32, %c0_i32_0 : i32, i32
  }
  func.func @transform_7(%arg0: i32) -> (i32, i32) {
    %c0_i32 = arith.constant 0 : i32
    %c0_i32_0 = arith.constant 0 : i32
    return %c0_i32, %arg0 : i32, i32
  }
}

</mosaic_0001>

<llo_original>
// kernel: tpu_custom_call.1
$region0: #{tpu_custom_call.1}
  #allocation0 [shape = 'u32[]', space=smem, size = 0x4, offset = 0x4, fixed_abs, tag = 'smem constant byte address 0x4 - core index']
  #allocation1 [shape = 'u32[72,128]{1,0:T(1,128)}', space=vmem, size = 0x9000, scoped, tag = 'internal scratch']
  #allocation2 [shape = 'f32[1,1]{1,0:T(1,128)S(1)}', space=vmem, size = 0x200, scoped, tag = 'scoped memory for tpu_custom_call.1']
  %s0 = inlined_call_operand.vmem [shape: f32[12,128], index: 0, kind: input, shape index: {}]
  %s1 = inlined_call_operand.vmem [shape: f32[32,12], index: 1, kind: input, shape index: {}]
  %s2 = inlined_call_operand.vmem [shape: f32[32,1], index: 2, kind: input, shape index: {}]
  %s3 = inlined_call_operand.vmem [shape: f32[32,32], index: 3, kind: input, shape index: {}]
  %s4 = inlined_call_operand.vmem [shape: f32[32,1], index: 4, kind: input, shape index: {}]
  %s5 = inlined_call_operand.vmem [shape: f32[32,1], index: 5, kind: input, shape index: {}]
  %s6 = inlined_call_operand.<no memory space> [shape: f32[1,1], index: 6, kind: input, shape index: {}]
  %s7 = inlined_call_operand.hbm [shape: f32[1,128], index: 7, kind: output, shape index: {}]
  %s8 = sld [smem:[#allocation0]]
  $region38: #{tpu_custom_call.1} parent=0
    _
  %s10 = ssub.s32 1, %s8
  %s11 = scalar_select 0, %s10, %s8
  %v12 = vstv %s6
  %13 = vst [vmem:[#allocation2] sm:$0x1] %v12
  $region1: #{tpu_custom_call.1} parent=0
    #allocation3 [shape = 'u8[512]{0}', space=vmem, size = 0x400, scoped, tag = 'output window, operand 0, single buffered']
    #allocation4 [shape = 's32[1]{0}', space=sflag, size = 0x4, scoped, tag = 'scoped memory for tpu_custom_call.1']
    %14 = vsyncpa [#allocation4], 0
    // Predicated region
    $region2: #{tpu_custom_call.1} parent=1 // pred_check
      _
    $region3: #{tpu_custom_call.1} parent=1 // pred_check_branch
      %16 = sbr.rel (0) target = $region5
    $region4: #{tpu_custom_call.1} parent=1 // pred_region
      _
    $region5: #{tpu_custom_call.1} parent=1 // pred_fallthru
      _
    // Predicated region
    $region6: #{tpu_custom_call.1} parent=1 // pred_check
      _
    $region7: #{tpu_custom_call.1} parent=1 // pred_check_branch
      %18 = sbr.rel (0) target = $region9
    $region8: #{tpu_custom_call.1} parent=1 // pred_region
      _
    $region9: #{tpu_custom_call.1} parent=1 // pred_fallthru
      _
    // Predicated region
    $region10: #{tpu_custom_call.1} parent=1 // pred_check
      _
    $region11: #{tpu_custom_call.1} parent=1 // pred_check_branch
      %20 = sbr.rel (0) target = $region13
    $region12: #{tpu_custom_call.1} parent=1 // pred_region
      _
    $region13: #{tpu_custom_call.1} parent=1 // pred_fallthru
      _
    // Predicated region
    $region14: #{tpu_custom_call.1} parent=1 // pred_check
      _
    $region15: #{tpu_custom_call.1} parent=1 // pred_check_branch
      %22 = sbr.rel (0) target = $region17
    $region16: #{tpu_custom_call.1} parent=1 // pred_region
      _
    $region17: #{tpu_custom_call.1} parent=1 // pred_fallthru
      _
    // Predicated region
    $region18: #{tpu_custom_call.1} parent=1 // pred_check
      _
    $region19: #{tpu_custom_call.1} parent=1 // pred_check_branch
      %24 = sbr.rel (0) target = $region21
    $region20: #{tpu_custom_call.1} parent=1 // pred_region
      _
    $region21: #{tpu_custom_call.1} parent=1 // pred_fallthru
      _
    // Predicated region
    $region22: #{tpu_custom_call.1} parent=1 // pred_check
      _
    $region23: #{tpu_custom_call.1} parent=1 // pred_check_branch
      %26 = sbr.rel (0) target = $region25
    $region24: #{tpu_custom_call.1} parent=1 // pred_region
      _
    $region25: #{tpu_custom_call.1} parent=1 // pred_fallthru
      _
    // Predicated region
    $region26: #{tpu_custom_call.1} parent=1 // pred_check
      _
    $region27: #{tpu_custom_call.1} parent=1 // pred_check_branch
      %28 = sbr.rel (0) target = $region29
    $region28: #{tpu_custom_call.1} parent=1 // pred_region
      _
    $region29: #{tpu_custom_call.1} parent=1 // pred_fallthru
      _
    %v29 = vld [vmem:[%s1] sm:$0xff]
    %v30 = vld [vmem:[%s1 + $0x8] sm:$0xff]
    %v31 = vld [vmem:[%s1 + $0x10] sm:$0xff]
    %v32 = vld [vmem:[%s1 + $0x18] sm:$0xff]
    %v33 = vld [vmem:[%s0] sm:$0xff]
    %v34 = vld [vmem:[%s0 + $0x8] sm:$0xf]
    %v35 = vld [vmem:[%s2] sm:$0xff]
    %v36 = vld [vmem:[%s2 + $0x8] sm:$0xff]
    %v37 = vld [vmem:[%s2 + $0x10] sm:$0xff]
    %v38 = vld [vmem:[%s2 + $0x18] sm:$0xff]
    %40 = vset.pattern.permute.xlu0 0
    %41 = vperm.xlu0 %40, %v35
    %v42 = vpop.permute.xlu0 %41
    %45 = vset.pattern.permute.xlu0 0
    %46 = vperm.xlu0 %45, %v36
    %v47 = vpop.permute.xlu0 %46
    %50 = vset.pattern.permute.xlu0 0
    %51 = vperm.xlu0 %50, %v37
    %v52 = vpop.permute.xlu0 %51
    %55 = vset.pattern.permute.xlu0 0
    %56 = vperm.xlu0 %55, %v38
    %v57 = vpop.permute.xlu0 %56
    %vm59 = vcmask 97280
    %v61 = vsel %vm59, %v29, 0
    %v64 = vsel %vm59, %v30, 0
    %v67 = vsel %vm59, %v31, 0
    %v70 = vsel %vm59, %v32, 0
    %vm72 = vcmask 1043456
    %v74 = vsel %vm72, %v34, 0
    %76 = vmatpush.msra.mxu0 0.0
    %77 = vmatpush.msra.mxu0 0.0
    %78 = vmatpush.msra.mxu0 0.0
    %79 = vmatpush.msra.mxu0 0.0
    %80 = vmatpush.msra.mxu0 0.0
    %81 = vmatpush.msra.mxu0 0.0
    %82 = vmatpush.msra.mxu0 0.0
    %83 = vmatpush.msra.mxu0 0.0
    %84 = vmatpush.msra.mxu0 0.0
    %85 = vmatpush.msra.mxu0 0.0
    %86 = vmatpush.msra.mxu0 0.0
    %87 = vmatpush.msra.mxu0 0.0
    %88 = vmatpush.msra.mxu0 0.0
    %89 = vmatpush.msra.mxu0 0.0
    %90 = vmatpush.msra.mxu0 %v74
    %91 = vmatpush.msra.mxu0 %v33
    %92 = vmatmul.f32.gmra.mxu0 %v61
    %v93 = vpop.f32.mrf.mxu0
    %v94 = vadd.f32 %v42, %v93
    %95 = vmatmul.f32.gmra.mxu0 %v64
    %v96 = vpop.f32.mrf.mxu0
    %v97 = vadd.f32 %v47, %v96
    %98 = vmatmul.f32.gmra.mxu0 %v67
    %v99 = vpop.f32.mrf.mxu0
    %v100 = vadd.f32 %v52, %v99
    %101 = vmatmul.f32.gmra.mxu0 %v70
    %v102 = vpop.f32.mrf.mxu0
    %v103 = vadd.f32 %v57, %v102
    %104 = vdwg.mxu0
    %v105 = vmax.f32 %v94, 0.0
    %v106 = vmax.f32 %v97, 0.0
    %v107 = vmax.f32 %v100, 0.0
    %v108 = vmax.f32 %v103, 0.0
    %v109 = vld [vmem:[%s3] sm:$0xff]
    %v110 = vld [vmem:[%s3 + $0x8] sm:$0xff]
    %v111 = vld [vmem:[%s3 + $0x10] sm:$0xff]
    %v112 = vld [vmem:[%s3 + $0x18] sm:$0xff]
    %v113 = vld [vmem:[%s4] sm:$0xff]
    %v114 = vld [vmem:[%s4 + $0x8] sm:$0xff]
    %v115 = vld [vmem:[%s4 + $0x10] sm:$0xff]
    %v116 = vld [vmem:[%s4 + $0x18] sm:$0xff]
    %118 = vset.pattern.permute.xlu0 0
    %119 = vperm.xlu0 %118, %v113
    %v120 = vpop.permute.xlu0 %119
    %123 = vset.pattern.permute.xlu0 0
    %124 = vperm.xlu0 %123, %v114
    %v125 = vpop.permute.xlu0 %124
    %128 = vset.pattern.permute.xlu0 0
    %129 = vperm.xlu0 %128, %v115
    %v130 = vpop.permute.xlu0 %129
    %133 = vset.pattern.permute.xlu0 0
    %134 = vperm.xlu0 %133, %v116
    %v135 = vpop.permute.xlu0 %134
    %vm137 = vcmask 261120
    %v139 = vsel %vm137, %v109, 0
    %v142 = vsel %vm137, %v110, 0
    %v145 = vsel %vm137, %v111, 0
    %v148 = vsel %vm137, %v112, 0
    %150 = vmatpush.msra.mxu0 0.0
    %151 = vmatpush.msra.mxu0 0.0
    %152 = vmatpush.msra.mxu0 0.0
    %153 = vmatpush.msra.mxu0 0.0
    %154 = vmatpush.msra.mxu0 0.0
    %155 = vmatpush.msra.mxu0 0.0
    %156 = vmatpush.msra.mxu0 0.0
    %157 = vmatpush.msra.mxu0 0.0
    %158 = vmatpush.msra.mxu0 0.0
    %159 = vmatpush.msra.mxu0 0.0
    %160 = vmatpush.msra.mxu0 0.0
    %161 = vmatpush.msra.mxu0 0.0
    %162 = vmatpush.msra.mxu0 %v108
    %163 = vmatpush.msra.mxu0 %v107
    %164 = vmatpush.msra.mxu0 %v106
    %165 = vmatpush.msra.mxu0 %v105
    %166 = vmatmul.f32.gmra.mxu0 %v139
    %v167 = vpop.f32.mrf.mxu0
    %v168 = vadd.f32 %v120, %v167
    %169 = vmatmul.f32.gmra.mxu0 %v142
    %v170 = vpop.f32.mrf.mxu0
    %v171 = vadd.f32 %v125, %v170
    %172 = vmatmul.f32.gmra.mxu0 %v145
    %v173 = vpop.f32.mrf.mxu0
    %v174 = vadd.f32 %v130, %v173
    %175 = vmatmul.f32.gmra.mxu0 %v148
    %v176 = vpop.f32.mrf.mxu0
    %v177 = vadd.f32 %v135, %v176
    %178 = vdwg.mxu0
    %v179 = vmax.f32 %v168, 0.0
    %v180 = vmax.f32 %v171, 0.0
    %v181 = vmax.f32 %v174, 0.0
    %v182 = vmax.f32 %v177, 0.0
    %v183 = vld [vmem:[%s5] sm:$0xff]
    %v184 = vld [vmem:[%s5 + $0x8] sm:$0xff]
    %v185 = vld [vmem:[%s5 + $0x10] sm:$0xff]
    %v186 = vld [vmem:[%s5 + $0x18] sm:$0xff]
    %188 = vset.pattern.permute.xlu0 0
    %189 = vperm.xlu0 %188, %v183
    %v190 = vpop.permute.xlu0 %189
    %193 = vset.pattern.permute.xlu0 0
    %194 = vperm.xlu0 %193, %v184
    %v195 = vpop.permute.xlu0 %194
    %198 = vset.pattern.permute.xlu0 0
    %199 = vperm.xlu0 %198, %v185
    %v200 = vpop.permute.xlu0 %199
    %203 = vset.pattern.permute.xlu0 0
    %204 = vperm.xlu0 %203, %v186
    %v205 = vpop.permute.xlu0 %204
    %v207 = vmul.f32 %v179, %v190
    %v208 = vmul.f32 %v180, %v195
    %v209 = vmul.f32 %v181, %v200
    %v210 = vmul.f32 %v182, %v205
    %v211 = vadd.f32 %v207, %v208
    %v212 = vadd.f32 %v211, %v209
    %v213 = vadd.f32 %v212, %v210
    %v214 = vrot.slane %v213, 4
    %v215 = vadd.f32 %v213, %v214
    %v216 = vrot.slane %v215, 2
    %v217 = vadd.f32 %v215, %v216
    %v218 = vrot.slane %v217, 1
    %v219 = vadd.f32 %v217, %v218
    %v220 = vld [vmem:[#allocation2] sm:$0x1]
    %222 = vset.pattern.permute.xlu0 0
    %223 = vperm.xlu0 %222, %v220
    %v224 = vpop.permute.xlu0 %223
    %v226 = vperm.slane %v224, 0
    %v227 = vadd.f32 %v219, %v226
    %228 = vst [vmem:[#allocation3] sm:$0x1] %v227
    // Predicated region
    $region30: #{tpu_custom_call.1} parent=1 // pred_check
      _
    $region31: #{tpu_custom_call.1} parent=1 // pred_check_branch
      %230 = sbr.rel (0) target = $region33
    $region32: #{tpu_custom_call.1} parent=1 // pred_region
      %232 = vsyncadd [#allocation4], 0
      %s234 = sshll.u32 [#allocation3], 4
      %s235 = int_to_ptr.vmem [resolvable:$true] %s234
      %s236 = sshll.u32 %s7, 4
      %s237 = int_to_ptr.hbm [resolvable:$true] %s236
      %239 = dma.vmem_to_hbm [thread:$0]  %s235, 16, %s237, [#allocation4]
    $region33: #{tpu_custom_call.1} parent=1 // pred_fallthru
      _
    // Predicated region
    $region34: #{tpu_custom_call.1} parent=1 // pred_check
      _
    $region35: #{tpu_custom_call.1} parent=1 // pred_check_branch
      %241 = sbr.rel (0) target = $region37
    $region36: #{tpu_custom_call.1} parent=1 // pred_region
      %243 = dma.done [#allocation4], 16
    $region37: #{tpu_custom_call.1} parent=1 // pred_fallthru
      _
    %244 = vsyncpa [#allocation4], 1

</llo_original>
